<compile_context>
chip_gen: v7x
topology: tpu7x:2x2x1
jax: 0.10.0
libtpu: 0.0.40
codegen_flags: <defaults>
</compile_context>

<pallas_src>
import jax
import jax.numpy as jnp
from jax.experimental import pallas as pl
from jax.experimental.pallas import tpu as pltpu

LANES = 128
# Per-block VMEM budget for the tiled copy fallback.  Input + output blocks are
# each double-buffered, so ~4 MiB/block stays well inside v7x's 32 MiB scoped VMEM.
_MAX_BLOCK_BYTES = 4 * 1024 * 1024


# ----------------------------------------------------------------------------
# Primary path: zero-copy identity (aliased HBM refs, no data movement).
# ----------------------------------------------------------------------------
def identity_noop_kernel(x_ref, o_ref):
    # Output aliases the input HBM buffer (input_output_aliases={0: 0}), so the
    # bytes are already where they need to be.  `touch` inserts a fake
    # read+write dependency so the aliased output is treated as produced by
    # this kernel; no DMA and no vreg traffic are issued.
    del x_ref
    pltpu.touch(o_ref)


def _identity_noop(x: jax.Array) -> jax.Array:
    if x.size == 0:
        return x
    return pl.pallas_call(
        identity_noop_kernel,
        out_shape=jax.ShapeDtypeStruct(x.shape, x.dtype),
        in_specs=[pl.BlockSpec(memory_space=pl.ANY)],
        out_specs=pl.BlockSpec(memory_space=pl.ANY),
        input_output_aliases={0: 0},  # output IS the (donated) input buffer
        cost_estimate=pl.CostEstimate(flops=0, transcendentals=0,
                                      bytes_accessed=0),
    )(x)


# ----------------------------------------------------------------------------
# Fallback path: explicit lane-dense VMEM copy (safety net).
# ----------------------------------------------------------------------------
def identity_copy_kernel(x_ref, o_ref):
    o_ref[...] = x_ref[...]


def _identity_copy(x: jax.Array) -> jax.Array:
    orig_shape = x.shape
    if x.size == 0:
        return x
    total = x.size
    if total % LANES == 0:
        # Lane-dense slab: last dim = 128 lanes -> full-width unmasked vld/vst.
        flat = x.reshape(total // LANES, LANES)
    else:
        # TODO(synk): pad to a lane-dense slab for huge non-128-multiple sizes.
        flat = x.reshape(1, total)
    rows, cols = flat.shape
    itemsize = flat.dtype.itemsize
    cost = pl.CostEstimate(flops=0, transcendentals=0,
                           bytes_accessed=2 * total * itemsize)

    if rows * cols * itemsize <= _MAX_BLOCK_BYTES or total % LANES != 0:
        # Small (or degenerate) tensor: whole array as one block, no grid.
        out = pl.pallas_call(
            identity_copy_kernel,
            out_shape=jax.ShapeDtypeStruct(flat.shape, flat.dtype),
            in_specs=[pl.BlockSpec(memory_space=pltpu.MemorySpace.VMEM)],
            out_specs=pl.BlockSpec(memory_space=pltpu.MemorySpace.VMEM),
            input_output_aliases={0: 0},
            cost_estimate=cost,
        )(flat)
    else:
        # Large tensor: tile rows so each block fits the scoped-VMEM budget and
        # the copy shards across TensorCores via the "parallel" grid axis.
        block_rows = max(8, _MAX_BLOCK_BYTES // (cols * itemsize))
        block_rows -= block_rows % 8
        out = pl.pallas_call(
            identity_copy_kernel,
            out_shape=jax.ShapeDtypeStruct(flat.shape, flat.dtype),
            grid=(pl.cdiv(rows, block_rows),),
            in_specs=[pl.BlockSpec((block_rows, cols), lambda i: (i, 0))],
            out_specs=pl.BlockSpec((block_rows, cols), lambda i: (i, 0)),
            input_output_aliases={0: 0},
            compiler_params=pltpu.CompilerParams(
                dimension_semantics=("parallel",)),
            cost_estimate=cost,
        )(flat)
    return out.reshape(orig_shape)


# Donate the argument so the Pallas io-alias is honoured without a defensive
# HBM copy of an otherwise-live jit input.
identity = jax.jit(_identity_noop, donate_argnums=0)
identity_copy = jax.jit(_identity_copy, donate_argnums=0)


if __name__ == "__main__":
    key = jax.random.PRNGKey(0)
    x = jax.random.normal(key, (2, 4, 16, 16), dtype=jnp.float32)
    x_host = jax.device_get(x)  # keep a host copy; the device arg is donated

    try:
        y = identity(x)
        jax.block_until_ready(y)
    except Exception:
        # Safety net: explicit lane-dense DMA-copy kernel (same semantics).
        x = jnp.asarray(x_host)
        y = identity_copy(x)
        jax.block_until_ready(y)

    assert y.shape == tuple(x_host.shape) and y.dtype == x_host.dtype
    assert jnp.array_equal(y, jnp.asarray(x_host))
    print("KERNEL_OK")
</pallas_src>

<mosaic_0001>
module attributes {stable_mosaic.version = 11 : i64} {
  func.func @identity_noop_kernel(%arg0: memref<2x4x16x16xf32, #tpu.memory_space<any>>, %arg1: memref<2x4x16x16xf32, #tpu.memory_space<any>>) attributes {dimension_semantics = [], scalar_prefetch = 0 : i64, scratch_operands = 0 : i64, tpu.core_type = #tpu.core_type<tc>} {
    return
  }
}

module attributes {stable_mosaic.version = 11 : i64} {
  func.func @identity_copy_kernel(%arg0: memref<16x128xf32, #tpu.memory_space<vmem>>, %arg1: memref<16x128xf32, #tpu.memory_space<vmem>>) attributes {dimension_semantics = [], scalar_prefetch = 0 : i64, scratch_operands = 0 : i64, tpu.core_type = #tpu.core_type<tc>} {
    %c0 = arith.constant 0 : index
    %c0_0 = arith.constant 0 : index
    %0 = vector.load %arg0[%c0, %c0_0] : memref<16x128xf32, #tpu.memory_space<vmem>>, vector<16x128xf32>
    %c0_1 = arith.constant 0 : index
    %c0_2 = arith.constant 0 : index
    %1 = vector.load %arg1[%c0_1, %c0_2] : memref<16x128xf32, #tpu.memory_space<vmem>>, vector<16x128xf32>
    tpu.vector_store %arg1[%c0_1, %c0_2], %0 {strides = array<i32>} : memref<16x128xf32, #tpu.memory_space<vmem>>, vector<16x128xf32>,
    return
  }
}

</mosaic_0001>

<llo_original>
// kernel: _identity_noop.1
$region0: #{_identity_noop.1}
  #allocation0 [shape = 'u32[]', space=smem, size = 0x4, offset = 0x4, fixed_abs, tag = 'smem constant byte address 0x4 - core index']
  #allocation1 [shape = 'u32[144,128]{1,0:T(1,128)}', space=vmem, size = 0x12000, scoped, tag = 'internal scratch']
  %s0 = inlined_call_operand.hbm [shape: f32[2,4,16,16], index: 0, kind: input, shape index: {}, may-alias: {0,1}]
  %s1 = inlined_call_operand.hbm [shape: f32[2,4,16,16], index: 1, kind: output, shape index: {}, may-alias: {0,1}]
  %s2 = sld [smem:[#allocation0]]
  $region2: #{_identity_noop.1} parent=0
    _
  %s4 = ssub.s32 1, %s2
  %s5 = scalar_select 0, %s4, %s2

// kernel: _identity_copy.1
$region0: #{_identity_copy.1}
  #allocation0 [shape = 'u32[]', space=smem, size = 0x4, offset = 0x4, fixed_abs, tag = 'smem constant byte address 0x4 - core index']
  #allocation1 [shape = 'u32[144,128]{1,0:T(1,128)}', space=vmem, size = 0x12000, scoped, tag = 'internal scratch']
  %s0 = inlined_call_operand.vmem [shape: f32[16,128], index: 0, kind: input, shape index: {}, may-alias: {0,1}]
  %s1 = inlined_call_operand.vmem [shape: f32[16,128], index: 1, kind: output, shape index: {}, may-alias: {0,1}]
  %s2 = sld [smem:[#allocation0]]
  $region14: #{_identity_copy.1} parent=0
    _
  %s4 = ssub.s32 1, %s2
  %s5 = scalar_select 0, %s4, %s2
  // Predicated region
  $region2: #{_identity_copy.1} parent=0 // pred_check
    _
  $region3: #{_identity_copy.1} parent=0 // pred_check_branch
    %7 = sbr.rel (0) target = $region5
  $region4: #{_identity_copy.1} parent=0 // pred_region
    _
  $region5: #{_identity_copy.1} parent=0 // pred_fallthru
    _
  %v8 = vld [vmem:[%s0] sm:$0xff]
  %v9 = vld [vmem:[%s0 + $0x8] sm:$0xff]
  %10 = vst [vmem:[%s1] sm:$0xff] %v8
  %11 = vst [vmem:[%s1 + $0x8] sm:$0xff] %v9
  // Predicated region
  $region6: #{_identity_copy.1} parent=0 // pred_check
    _
  $region7: #{_identity_copy.1} parent=0 // pred_check_branch
    %13 = sbr.rel (0) target = $region9
  $region8: #{_identity_copy.1} parent=0 // pred_region
    _
  $region9: #{_identity_copy.1} parent=0 // pred_fallthru
    _
  // Predicated region
  $region10: #{_identity_copy.1} parent=0 // pred_check
    _
  $region11: #{_identity_copy.1} parent=0 // pred_check_branch
    %15 = sbr.rel (0) target = $region13
  $region12: #{_identity_copy.1} parent=0 // pred_region
    _
  $region13: #{_identity_copy.1} parent=0 // pred_fallthru
    _

</llo_original>
